<compile_context>
chip_gen: v7x
topology: tpu7x:2x2x1
jax: 0.10.0
libtpu: 0.0.40
codegen_flags: <defaults>
</compile_context>

<pallas_src>
import functools

import jax
import jax.numpy as jnp
import numpy as np
from jax import lax
from jax.experimental import pallas as pl
from jax.experimental.pallas import tpu as pltpu

# MXU operand dtype (accumulation is always f32 via preferred_element_type).
MXU_DTYPE = jnp.bfloat16


@functools.lru_cache(maxsize=1)
def _roll_matches_jnp() -> bool:
    """One-time probe of pltpu.roll's rotation convention (robust to version drift)."""
    def probe(x_ref, o_ref):
        o_ref[...] = pltpu.roll(x_ref[...], 1, axis=1)

    x = lax.broadcasted_iota(jnp.float32, (8, 128), 1)
    out = pl.pallas_call(
        probe, out_shape=jax.ShapeDtypeStruct((8, 128), jnp.float32))(x)
    # jnp.roll(x, +1) brings the last element to the front.
    return bool(out[0, 0] == 127.0)


def _make_kernel(C, H, W, Nb, Kpad, roll_like_jnp):
    HW = H * W
    NBHW = Nb * HW
    K9 = 9 * C

    def shifted(src, d):
        # out[:, p] == src[:, p + d]; wrapped lanes (image borders and the seams
        # between the Nb concatenated images) are zeroed by the tap masks.
        if d == 0:
            return src
        shift = (-d) % NBHW if roll_like_jnp else d % NBHW
        return pltpu.roll(src, shift, axis=1)

    def conv3x3_bias(src, w_ref, m_ref, taps_ref):
        # src: (C, Nb*HW) f32.  Assemble im2col rows 0..9C-1 (bf16) and contract
        # against the (C, Kpad) folded weight-plus-bias in ONE MXU matmul.
        # Row K9 of taps is all-ones (bias); rows above it are zero.
        for ky in range(3):
            for kx in range(3):
                k = ky * 3 + kx
                d = (ky - 1) * W + (kx - 1)
                tap = shifted(src, d) * m_ref[k]              # (C, Nb*HW) f32, VPU
                taps_ref[k * C:(k + 1) * C, :] = tap.astype(taps_ref.dtype)
        return jnp.dot(w_ref[...], taps_ref[...],
                       preferred_element_type=jnp.float32)    # (C, Nb*HW) + bias

    def kernel(x_ref, m_ref, w1_ref, w2_ref, out_ref, taps_ref, xcat_ref):
        # Bias (all-ones) row and K-pad rows of the taps scratch.  The pad rows
        # meet zero weight columns but must not hold NaN garbage.
        taps_ref[K9:K9 + 1, :] = jnp.ones((1, NBHW), taps_ref.dtype)
        if Kpad > K9 + 1:
            taps_ref[K9 + 1:Kpad, :] = jnp.zeros((Kpad - K9 - 1, NBHW),
                                                 taps_ref.dtype)

        # Lay the Nb images of this group side by side on the lane axis
        # (f32 residual / conv-source plane).  HW is a multiple of 128, so
        # these are plain lane-dense VMEM copies.
        for n in range(Nb):
            xcat_ref[:, n * HW:(n + 1) * HW] = x_ref[n].astype(jnp.float32)

        h = conv3x3_bias(xcat_ref[...], w1_ref, m_ref, taps_ref)
        h = jnp.maximum(h, 0.0)                               # ReLU (VPU, f32)
        h = conv3x3_bias(h, w2_ref, m_ref, taps_ref)
        y = h * 0.1 + xcat_ref[...]                           # residual add, f32
        for n in range(Nb):
            out_ref[n] = y[:, n * HW:(n + 1) * HW].astype(out_ref.dtype)

    return kernel


@functools.lru_cache(maxsize=8)
def _tap_masks_np(H, W):
    """(9, H*W) {0,1} masks: tap k = ky*3+kx lies inside the image at flat pixel p."""
    yy, xx = np.meshgrid(np.arange(H), np.arange(W), indexing="ij")
    masks = []
    for ky in range(3):
        for kx in range(3):
            dy, dx = ky - 1, kx - 1
            m = ((yy + dy >= 0) & (yy + dy < H) &
                 (xx + dx >= 0) & (xx + dx < W))
            masks.append(m.reshape(H * W))
    return np.stack(masks).astype(np.float32)


@functools.lru_cache(maxsize=8)
def _tap_masks(C, H, W, Nb):
    """Masks tiled over the Nb images of a group and pre-broadcast over channels,
    so in-kernel masking needs no sublane broadcast: shape (9, C, Nb*H*W)."""
    m = np.tile(_tap_masks_np(H, W), (1, Nb))                 # (9, Nb*HW)
    m = np.broadcast_to(m[:, None, :], (9, C, Nb * H * W))
    return jnp.asarray(np.ascontiguousarray(m))


def _fold_weight_bias(w_oihw, b, Kpad):
    """OIHW 3x3 weight -> (C_out, Kpad) im2col matrix; the bias lives in column
    9*C_in (matched by the all-ones taps row); remaining pad columns are zero."""
    C_out, C_in = w_oihw.shape[0], w_oihw.shape[1]
    K9 = 9 * C_in
    wf = jnp.transpose(w_oihw, (0, 2, 3, 1)).reshape(C_out, K9)
    wf = jnp.concatenate(
        [wf, b.reshape(C_out, 1),
         jnp.zeros((C_out, Kpad - K9 - 1), wf.dtype)], axis=1)
    return wf.astype(MXU_DTYPE)


def _default_num_groups(N):
    """>= 2 "parallel" grid steps on 2-TensorCore parts (v7x); a single step on
    single-TC v5e/v6e (grid-step overhead dominates at this problem size)."""
    try:
        kind = jax.devices()[0].device_kind.lower()
        multi_tc = "7" in kind
    except Exception:
        multi_tc = True        # correct either way; only a perf heuristic
    return 2 if (multi_tc and N >= 2) else 1


def residual_block(x_nchw, w1_oihw, b1, w2_oihw, b2, num_groups=None):
    """x_nchw: (N, C, H, W) float32; weights in PyTorch OIHW layout."""
    N, C, H, W = x_nchw.shape
    HW = H * W
    K9 = 9 * C
    Kpad = ((K9 + 1 + 7) // 8) * 8             # +1 all-ones row for the fused bias

    if num_groups is None:
        num_groups = _default_num_groups(N)
    num_groups = max(1, min(int(num_groups), N))
    while N % num_groups:                      # need equal-size batch groups
        num_groups -= 1
    Nb = N // num_groups
    NBHW = Nb * HW

    # One-time / cacheable preamble: free spatial flatten, im2col weight fold
    # with fused bias, pre-broadcast boundary masks, roll-convention probe.
    x_flat = x_nchw.reshape(N, C, HW)
    w1_f = _fold_weight_bias(w1_oihw, b1, Kpad)
    w2_f = _fold_weight_bias(w2_oihw, b2, Kpad)
    masks = _tap_masks(C, H, W, Nb)

    kernel = _make_kernel(C, H, W, Nb, Kpad, _roll_matches_jnp())

    cost = pl.CostEstimate(
        flops=2 * 2 * C * Kpad * N * HW,       # two im2col matmuls per image
        transcendentals=0,
        bytes_accessed=int(2 * x_flat.size * 4 + masks.size * 4
                           + (w1_f.size + w2_f.size) * 2))

    out_flat = pl.pallas_call(
        kernel,
        out_shape=jax.ShapeDtypeStruct((N, C, HW), x_nchw.dtype),
        grid=(num_groups,),
        in_specs=[
            pl.BlockSpec((Nb, C, HW), lambda g: (g, 0, 0)),    # x group (+ residual)
            pl.BlockSpec((9, C, NBHW), lambda g: (0, 0, 0)),   # tap boundary masks
            pl.BlockSpec((C, Kpad), lambda g: (0, 0)),         # w1 (+ bias column)
            pl.BlockSpec((C, Kpad), lambda g: (0, 0)),         # w2 (+ bias column)
        ],
        out_specs=pl.BlockSpec((Nb, C, HW), lambda g: (g, 0, 0)),
        scratch_shapes=[
            pltpu.VMEM((Kpad, NBHW), MXU_DTYPE),   # im2col taps (+ ones / pad rows)
            pltpu.VMEM((C, NBHW), jnp.float32),    # batch-concat residual plane
        ],
        compiler_params=pltpu.CompilerParams(
            dimension_semantics=("parallel",)),
        cost_estimate=cost,
    )(x_flat, masks, w1_f, w2_f)

    return out_flat.reshape(N, C, H, W)


def reference_residual_block(x_nchw, w1, b1, w2, b2):
    """Pure-JAX reference matching PyTorch semantics (NCHW / OIHW, f32)."""
    dn = lax.conv_dimension_numbers(x_nchw.shape, w1.shape, ("NCHW", "OIHW", "NCHW"))
    c1 = lax.conv_general_dilated(x_nchw, w1, (1, 1), ((1, 1), (1, 1)),
                                  dimension_numbers=dn) + b1[None, :, None, None]
    c1 = jnp.maximum(c1, 0.0)
    c2 = lax.conv_general_dilated(c1, w2, (1, 1), ((1, 1), (1, 1)),
                                  dimension_numbers=dn) + b2[None, :, None, None]
    return c2 * 0.1 + x_nchw


if __name__ == "__main__":
    N, C, H, W = 2, 4, 16, 16
    key = jax.random.PRNGKey(0)
    kx, kw1, kb1, kw2, kb2 = jax.random.split(key, 5)

    x = jax.random.normal(kx, (N, C, H, W), dtype=jnp.float32)
    # Deterministic synthetic parameters (shapes from nn.Conv2d(C, C, 3, padding=1)).
    fan_in = C * 3 * 3
    bound = 1.0 / (fan_in ** 0.5)
    w1 = jax.random.uniform(kw1, (C, C, 3, 3), jnp.float32, -bound, bound)
    b1 = jax.random.uniform(kb1, (C,), jnp.float32, -bound, bound)
    w2 = jax.random.uniform(kw2, (C, C, 3, 3), jnp.float32, -bound, bound)
    b2 = jax.random.uniform(kb2, (C,), jnp.float32, -bound, bound)

    out = jax.block_until_ready(residual_block(x, w1, b1, w2, b2))
    ref = jax.block_until_ready(reference_residual_block(x, w1, b1, w2, b2))

    assert out.shape == (N, C, H, W)
    # bf16 MXU operands (f32 accumulate) vs the f32 reference -> ~1e-3 level error.
    err = float(jnp.max(jnp.abs(out - ref)))
    assert err < 3e-2, f"max abs err {err}"

    print("KERNEL_OK")
</pallas_src>

<mosaic_0001>
module attributes {stable_mosaic.version = 11 : i64} {
  func.func @probe(%arg0: memref<8x128xf32, #tpu.memory_space<vmem>>, %arg1: memref<8x128xf32, #tpu.memory_space<vmem>>) attributes {dimension_semantics = [], scalar_prefetch = 0 : i64, scratch_operands = 0 : i64, tpu.core_type = #tpu.core_type<tc>} {
    %c0 = arith.constant 0 : index
    %c0_0 = arith.constant 0 : index
    %0 = vector.load %arg0[%c0, %c0_0] : memref<8x128xf32, #tpu.memory_space<vmem>>, vector<8x128xf32>
    %c1_i32 = arith.constant 1 : i32
    %1 = tpu.dynamic_rotate %0 by %c1_i32 dim 1 : vector<8x128xf32>, i32 -> vector<8x128xf32>
    %c0_1 = arith.constant 0 : index
    %c0_2 = arith.constant 0 : index
    %2 = vector.load %arg1[%c0_1, %c0_2] : memref<8x128xf32, #tpu.memory_space<vmem>>, vector<8x128xf32>
    tpu.vector_store %arg1[%c0_1, %c0_2], %1 {strides = array<i32>} : memref<8x128xf32, #tpu.memory_space<vmem>>, vector<8x128xf32>,
    return
  }
}

</mosaic_0001>

<llo_original>
// kernel: tpu_custom_call.1
$region0: #{tpu_custom_call.1}
  #allocation0 [shape = 'u32[]', space=smem, size = 0x4, offset = 0x4, fixed_abs, tag = 'smem constant byte address 0x4 - core index']
  #allocation1 [shape = 'u32[144,128]{1,0:T(1,128)}', space=vmem, size = 0x12000, scoped, tag = 'internal scratch']
  %s0 = inlined_call_operand.hbm [shape: f32[8,128], index: 0, kind: input, shape index: {}]
  %s1 = inlined_call_operand.hbm [shape: f32[8,128], index: 1, kind: output, shape index: {}]
  %s2 = sld [smem:[#allocation0]]
  $region18: #{tpu_custom_call.1} parent=0
    _
  %s4 = ssub.s32 1, %s2
  %s5 = scalar_select 0, %s4, %s2
  $region1: #{tpu_custom_call.1} parent=0
    #allocation2 [shape = 'u8[4096]{0}', space=vmem, size = 0x1000, scoped, tag = 'input window, operand 0, single buffered']
    #allocation3 [shape = 's32[1]{0}', space=sflag, size = 0x4, scoped, tag = 'scoped memory for tpu_custom_call.1']
    #allocation4 [shape = 's32[1]{0}', space=sflag, size = 0x4, scoped, tag = 'scoped memory for tpu_custom_call.1']
    #allocation5 [shape = 'u8[4096]{0}', space=vmem, size = 0x1000, scoped, tag = 'output window, operand 0, single buffered']
    %6 = vsyncpa [#allocation3], 0
    %7 = vsyncpa [#allocation4], 0
    // Predicated region
    $region2: #{tpu_custom_call.1} parent=1 // pred_check
      _
    $region3: #{tpu_custom_call.1} parent=1 // pred_check_branch
      %9 = sbr.rel (0) target = $region5
    $region4: #{tpu_custom_call.1} parent=1 // pred_region
      %s11 = ssub.s32 128, 128
      %12 = vsyncadd [#allocation3], %s11
      %s14 = sshll.u32 [#allocation2], 4
      %s15 = int_to_ptr.vmem [resolvable:$true] %s14
      %17 = dma.hbm_to_vmem [thread:$0]  %s0, 128, %s15, [#allocation3]
    $region5: #{tpu_custom_call.1} parent=1 // pred_fallthru
      _
    // Predicated region
    $region6: #{tpu_custom_call.1} parent=1 // pred_check
      _
    $region7: #{tpu_custom_call.1} parent=1 // pred_check_branch
      %19 = sbr.rel (0) target = $region9
    $region8: #{tpu_custom_call.1} parent=1 // pred_region
      %20 = dma.done [#allocation3], 128
    $region9: #{tpu_custom_call.1} parent=1 // pred_fallthru
      _
    %v21 = vld [vmem:[#allocation2] sm:$0xff]
    %22 = vrot.lane.b32.xlu0 %v21, 1
    %v23 = vpop.permute.xlu0 %22
    %24 = vst [vmem:[#allocation5] sm:$0xff] %v23
    // Predicated region
    $region10: #{tpu_custom_call.1} parent=1 // pred_check
      _
    $region11: #{tpu_custom_call.1} parent=1 // pred_check_branch
      %26 = sbr.rel (0) target = $region13
    $region12: #{tpu_custom_call.1} parent=1 // pred_region
      %s28 = ssub.s32 128, 128
      %29 = vsyncadd [#allocation4], %s28
      %s31 = sshll.u32 [#allocation5], 4
      %s32 = int_to_ptr.vmem [resolvable:$true] %s31
      %34 = dma.vmem_to_hbm [thread:$0]  %s32, 128, %s1, [#allocation4]
    $region13: #{tpu_custom_call.1} parent=1 // pred_fallthru
      _
    // Predicated region
    $region14: #{tpu_custom_call.1} parent=1 // pred_check
      _
    $region15: #{tpu_custom_call.1} parent=1 // pred_check_branch
      %36 = sbr.rel (0) target = $region17
    $region16: #{tpu_custom_call.1} parent=1 // pred_region
      %37 = dma.done [#allocation4], 128
    $region17: #{tpu_custom_call.1} parent=1 // pred_fallthru
      _
    %38 = vsyncpa [#allocation3], 1
    %39 = vsyncpa [#allocation4], 1

</llo_original>
